<compile_context>
chip_gen: v7x
topology: tpu7x:2x2x1
jax: 0.10.0
libtpu: 0.0.40
codegen_flags: <defaults>
</compile_context>

<pallas_src>
import functools

import jax
import jax.numpy as jnp
from jax.experimental import pallas as pl
from jax.experimental.pallas import tpu as pltpu


def _round_up(x, m):
    return ((x + m - 1) // m) * m


def _tsk_kernel(ant_ref, cons_ref, out_ref):
    # ant_ref : (R, TN)      rule firing strengths, batch on the lane axis
    # cons_ref: (R, C, TN)   per-rule consequent outputs, batch on the lane axis
    # out_ref : (C, TN)      defuzzified outputs, batch on the lane axis
    a = ant_ref[...].astype(jnp.float32)           # (R, TN)
    c = cons_ref[...].astype(jnp.float32)          # (R, C, TN)
    n_rules = a.shape[0]

    # Unnormalized weighted sum over rules + running sum of firings,
    # accumulated as a short unrolled loop of full-lane VPU multiply-adds
    # (avoids materializing an (R, C, TN) broadcast temporary).
    a0 = a[0:1, :]                                 # (1, TN)
    y = a0 * c[0]                                  # (C, TN)
    s = a0                                         # (1, TN)
    for r in range(1, n_rules):
        ar = a[r:r + 1, :]
        y = y + ar * c[r]
        s = s + ar

    # Single normalization multiply on the small (C, TN) result.
    # approx=True runs on the otherwise-idle EUP; one Newton step restores
    # full f32 accuracy (error ~e^2 ~ 2^-24, well under the 1e-5 tolerance).
    inv = pl.reciprocal(s, approx=True)            # (1, TN)
    inv = inv * (2.0 - s * inv)
    out_ref[...] = (y * inv).astype(out_ref.dtype)


@functools.partial(jax.jit, static_argnames=("n_classes", "tile_n"))
def tsk_inference(antecedents, consequents, *, n_classes, tile_n=2048):
    """antecedents: (N, R); consequents: (N, R) if n_classes==1 else (N, R*n_classes)."""
    N, R = antecedents.shape
    C = n_classes
    cons3 = consequents.reshape(N, R, C)           # matches torch .view(-1, R, C)

    # Lane-dense transposed layout: batch N on the lane (last) axis.
    ant_t = antecedents.T                          # (R, N)
    cons_t = jnp.transpose(cons3, (1, 2, 0))       # (R, C, N)

    # Batch tile: as large as tile_n allows, capped by a conservative VMEM
    # budget (double-buffered blocks stay well under the scoped limit on every
    # TPU generation), and 128-aligned on the lane axis.
    bytes_per_row = 4 * (R + R * C + C)            # f32 bytes per batch row per buffer set
    vmem_budget = 24 << 20                         # headroom under the 32 MiB scoped limit
    max_tn_vmem = max(128, (vmem_budget // (2 * bytes_per_row)) // 128 * 128)
    tn = min(_round_up(tile_n, 128), max_tn_vmem, _round_up(N, 128))

    # ceil-div grid with padding: no divisibility requirement on N.
    Np = _round_up(N, tn)
    if Np != N:
        # Pad antecedents with 1.0 so padded rows never divide by zero.
        ant_t = jnp.pad(ant_t, ((0, 0), (0, Np - N)), constant_values=1.0)
        cons_t = jnp.pad(cons_t, ((0, 0), (0, 0), (0, Np - N)))

    grid = (Np // tn,)

    out_t = pl.pallas_call(
        _tsk_kernel,
        out_shape=jax.ShapeDtypeStruct((C, Np), antecedents.dtype),
        grid_spec=pltpu.PrefetchScalarGridSpec(
            num_scalar_prefetch=0,
            grid=grid,
            in_specs=[
                pl.BlockSpec((R, tn), lambda i: (0, i)),
                pl.BlockSpec((R, C, tn), lambda i: (0, 0, i)),
            ],
            out_specs=pl.BlockSpec((C, tn), lambda i: (0, i)),
        ),
        compiler_params=pltpu.CompilerParams(
            dimension_semantics=("parallel",),     # batch grid sharded across TCs (v7x)
            vmem_limit_bytes=32 << 20,
        ),
    )(ant_t, cons_t)

    out = out_t[:, :N].T                           # (N, C)
    # torch `.squeeze()` squeezes every size-1 dim (regression -> (N,), etc.)
    out = jnp.squeeze(out)
    # output_activation = Identity -> nothing to apply.
    return out


def _reference(antecedents, consequents, n_classes):
    w = antecedents / jnp.sum(antecedents, axis=1, keepdims=True)
    N, R = antecedents.shape
    cons3 = consequents.reshape(N, R, n_classes)
    y = jnp.sum(w[:, :, None] * cons3, axis=1)
    return jnp.squeeze(y)


if __name__ == "__main__":
    key = jax.random.PRNGKey(0)
    k1, k2, k3, k4, k5, k6 = jax.random.split(key, 6)

    N, R, C = 16, 8, 4  # batch, rules, classes

    # Classification mode (n_classes > 1)
    antecedents = jax.random.uniform(k1, (N, R), dtype=jnp.float32) + 0.1  # positive firings
    consequents = jax.random.normal(k2, (N, R * C), dtype=jnp.float32)
    y_cls = tsk_inference(antecedents, consequents, n_classes=C)
    jax.block_until_ready(y_cls)
    ref_cls = _reference(antecedents, consequents, C)
    assert y_cls.shape == (N, C)
    assert jnp.allclose(y_cls, ref_cls, rtol=1e-5, atol=1e-5)

    # Regression mode (n_classes == 1)
    antecedents_r = jax.random.uniform(k3, (N, R), dtype=jnp.float32) + 0.1
    consequents_r = jax.random.normal(k4, (N, R), dtype=jnp.float32)
    y_reg = tsk_inference(antecedents_r, consequents_r, n_classes=1)
    jax.block_until_ready(y_reg)
    ref_reg = _reference(antecedents_r, consequents_r, 1)
    assert y_reg.shape == (N,)
    assert jnp.allclose(y_reg, ref_reg, rtol=1e-5, atol=1e-5)

    # Ragged batch exercising the ceil-div grid + tail padding (multi-tile path).
    N2 = 300
    antecedents_m = jax.random.uniform(k5, (N2, R), dtype=jnp.float32) + 0.1
    consequents_m = jax.random.normal(k6, (N2, R * C), dtype=jnp.float32)
    y_m = tsk_inference(antecedents_m, consequents_m, n_classes=C, tile_n=128)
    jax.block_until_ready(y_m)
    ref_m = _reference(antecedents_m, consequents_m, C)
    assert y_m.shape == (N2, C)
    assert jnp.allclose(y_m, ref_m, rtol=1e-5, atol=1e-5)

    print("KERNEL_OK")
</pallas_src>

<mosaic_0001>
module attributes {stable_mosaic.version = 11 : i64} {
  func.func @_tsk_kernel(%arg0: i32, %arg1: memref<8x128xf32, #tpu.memory_space<vmem>>, %arg2: memref<8x4x128xf32, #tpu.memory_space<vmem>>, %arg3: memref<4x128xf32, #tpu.memory_space<vmem>>) attributes {dimension_semantics = [#tpu.dimension_semantics<parallel>], iteration_bounds = array<i64: 1>, scalar_prefetch = 0 : i64, scratch_operands = 0 : i64, tpu.core_type = #tpu.core_type<tc>, window_params = [{transform_indices = @transform_0, window_bounds = array<i64: 8, 128>}, {transform_indices = @transform_1, window_bounds = array<i64: 8, 4, 128>}, {transform_indices = @transform_2, window_bounds = array<i64: 4, 128>}]} {
    %c0 = arith.constant 0 : index
    %c0_0 = arith.constant 0 : index
    %0 = vector.load %arg1[%c0, %c0_0] : memref<8x128xf32, #tpu.memory_space<vmem>>, vector<8x128xf32>
    %c0_1 = arith.constant 0 : index
    %c0_2 = arith.constant 0 : index
    %c0_3 = arith.constant 0 : index
    %1 = vector.load %arg2[%c0_1, %c0_2, %c0_3] : memref<8x4x128xf32, #tpu.memory_space<vmem>>, vector<8x4x128xf32>
    %2 = vector.extract_strided_slice %0 {offsets = [0, 0], sizes = [1, 128], strides = [1, 1]} : vector<8x128xf32> to vector<1x128xf32>
    %3 = vector.extract_strided_slice %1 {offsets = [0, 0, 0], sizes = [1, 4, 128], strides = [1, 1, 1]} : vector<8x4x128xf32> to vector<1x4x128xf32>
    %4 = vector.shape_cast %3 : vector<1x4x128xf32> to vector<4x128xf32>
    %5 = vector.broadcast %2 : vector<1x128xf32> to vector<4x128xf32>
    %6 = arith.mulf %5, %4 : vector<4x128xf32>
    %7 = vector.extract_strided_slice %0 {offsets = [1, 0], sizes = [1, 128], strides = [1, 1]} : vector<8x128xf32> to vector<1x128xf32>
    %8 = vector.extract_strided_slice %1 {offsets = [1, 0, 0], sizes = [1, 4, 128], strides = [1, 1, 1]} : vector<8x4x128xf32> to vector<1x4x128xf32>
    %9 = vector.shape_cast %8 : vector<1x4x128xf32> to vector<4x128xf32>
    %10 = vector.broadcast %7 : vector<1x128xf32> to vector<4x128xf32>
    %11 = arith.mulf %10, %9 : vector<4x128xf32>
    %12 = arith.addf %6, %11 : vector<4x128xf32>
    %13 = arith.addf %2, %7 : vector<1x128xf32>
    %14 = vector.extract_strided_slice %0 {offsets = [2, 0], sizes = [1, 128], strides = [1, 1]} : vector<8x128xf32> to vector<1x128xf32>
    %15 = vector.extract_strided_slice %1 {offsets = [2, 0, 0], sizes = [1, 4, 128], strides = [1, 1, 1]} : vector<8x4x128xf32> to vector<1x4x128xf32>
    %16 = vector.shape_cast %15 : vector<1x4x128xf32> to vector<4x128xf32>
    %17 = vector.broadcast %14 : vector<1x128xf32> to vector<4x128xf32>
    %18 = arith.mulf %17, %16 : vector<4x128xf32>
    %19 = arith.addf %12, %18 : vector<4x128xf32>
    %20 = arith.addf %13, %14 : vector<1x128xf32>
    %21 = vector.extract_strided_slice %0 {offsets = [3, 0], sizes = [1, 128], strides = [1, 1]} : vector<8x128xf32> to vector<1x128xf32>
    %22 = vector.extract_strided_slice %1 {offsets = [3, 0, 0], sizes = [1, 4, 128], strides = [1, 1, 1]} : vector<8x4x128xf32> to vector<1x4x128xf32>
    %23 = vector.shape_cast %22 : vector<1x4x128xf32> to vector<4x128xf32>
    %24 = vector.broadcast %21 : vector<1x128xf32> to vector<4x128xf32>
    %25 = arith.mulf %24, %23 : vector<4x128xf32>
    %26 = arith.addf %19, %25 : vector<4x128xf32>
    %27 = arith.addf %20, %21 : vector<1x128xf32>
    %28 = vector.extract_strided_slice %0 {offsets = [4, 0], sizes = [1, 128], strides = [1, 1]} : vector<8x128xf32> to vector<1x128xf32>
    %29 = vector.extract_strided_slice %1 {offsets = [4, 0, 0], sizes = [1, 4, 128], strides = [1, 1, 1]} : vector<8x4x128xf32> to vector<1x4x128xf32>
    %30 = vector.shape_cast %29 : vector<1x4x128xf32> to vector<4x128xf32>
    %31 = vector.broadcast %28 : vector<1x128xf32> to vector<4x128xf32>
    %32 = arith.mulf %31, %30 : vector<4x128xf32>
    %33 = arith.addf %26, %32 : vector<4x128xf32>
    %34 = arith.addf %27, %28 : vector<1x128xf32>
    %35 = vector.extract_strided_slice %0 {offsets = [5, 0], sizes = [1, 128], strides = [1, 1]} : vector<8x128xf32> to vector<1x128xf32>
    %36 = vector.extract_strided_slice %1 {offsets = [5, 0, 0], sizes = [1, 4, 128], strides = [1, 1, 1]} : vector<8x4x128xf32> to vector<1x4x128xf32>
    %37 = vector.shape_cast %36 : vector<1x4x128xf32> to vector<4x128xf32>
    %38 = vector.broadcast %35 : vector<1x128xf32> to vector<4x128xf32>
    %39 = arith.mulf %38, %37 : vector<4x128xf32>
    %40 = arith.addf %33, %39 : vector<4x128xf32>
    %41 = arith.addf %34, %35 : vector<1x128xf32>
    %42 = vector.extract_strided_slice %0 {offsets = [6, 0], sizes = [1, 128], strides = [1, 1]} : vector<8x128xf32> to vector<1x128xf32>
    %43 = vector.extract_strided_slice %1 {offsets = [6, 0, 0], sizes = [1, 4, 128], strides = [1, 1, 1]} : vector<8x4x128xf32> to vector<1x4x128xf32>
    %44 = vector.shape_cast %43 : vector<1x4x128xf32> to vector<4x128xf32>
    %45 = vector.broadcast %42 : vector<1x128xf32> to vector<4x128xf32>
    %46 = arith.mulf %45, %44 : vector<4x128xf32>
    %47 = arith.addf %40, %46 : vector<4x128xf32>
    %48 = arith.addf %41, %42 : vector<1x128xf32>
    %49 = vector.extract_strided_slice %0 {offsets = [7, 0], sizes = [1, 128], strides = [1, 1]} : vector<8x128xf32> to vector<1x128xf32>
    %50 = vector.extract_strided_slice %1 {offsets = [7, 0, 0], sizes = [1, 4, 128], strides = [1, 1, 1]} : vector<8x4x128xf32> to vector<1x4x128xf32>
    %51 = vector.shape_cast %50 : vector<1x4x128xf32> to vector<4x128xf32>
    %52 = vector.broadcast %49 : vector<1x128xf32> to vector<4x128xf32>
    %53 = arith.mulf %52, %51 : vector<4x128xf32>
    %54 = arith.addf %47, %53 : vector<4x128xf32>
    %55 = arith.addf %48, %49 : vector<1x128xf32>
    %56 = tpu.reciprocal %55 {approx = true} : vector<1x128xf32> -> vector<1x128xf32>
    %57 = arith.mulf %55, %56 : vector<1x128xf32>
    %cst = arith.constant 2.000000e+00 : f32
    %58 = vector.broadcast %cst : f32 to vector<1x128xf32>
    %59 = arith.subf %58, %57 : vector<1x128xf32>
    %60 = arith.mulf %56, %59 : vector<1x128xf32>
    %61 = vector.broadcast %60 : vector<1x128xf32> to vector<4x128xf32>
    %62 = arith.mulf %54, %61 : vector<4x128xf32>
    %c0_4 = arith.constant 0 : index
    %c0_5 = arith.constant 0 : index
    %63 = vector.load %arg3[%c0_4, %c0_5] : memref<4x128xf32, #tpu.memory_space<vmem>>, vector<4x128xf32>
    tpu.vector_store %arg3[%c0_4, %c0_5], %62 {strides = array<i32>} : memref<4x128xf32, #tpu.memory_space<vmem>>, vector<4x128xf32>,
    return
  }
  func.func @transform_0(%arg0: i32) -> (i32, i32) {
    %c0_i32 = arith.constant 0 : i32
    %c0_i32_0 = arith.constant 0 : i32
    return %c0_i32, %arg0 : i32, i32
  }
  func.func @transform_1(%arg0: i32) -> (i32, i32, i32) {
    %c0_i32 = arith.constant 0 : i32
    %c0_i32_0 = arith.constant 0 : i32
    %c0_i32_1 = arith.constant 0 : i32
    return %c0_i32, %c0_i32_0, %arg0 : i32, i32, i32
  }
  func.func @transform_2(%arg0: i32) -> (i32, i32) {
    %c0_i32 = arith.constant 0 : i32
    %c0_i32_0 = arith.constant 0 : i32
    return %c0_i32, %arg0 : i32, i32
  }
}

</mosaic_0001>

<llo_original>
// kernel: tsk_inference.1
$region0: #{tsk_inference.1}
  #allocation0 [shape = 'u32[]', space=smem, size = 0x4, offset = 0x4, fixed_abs, tag = 'smem constant byte address 0x4 - core index']
  #allocation1 [shape = 'u32[144,128]{1,0:T(1,128)}', space=vmem, size = 0x12000, scoped, tag = 'internal scratch']
  %s0 = inlined_call_operand.vmem [shape: f32[8,128], index: 0, kind: input, shape index: {}]
  %s1 = inlined_call_operand.vmem [shape: f32[8,4,128], index: 1, kind: input, shape index: {}]
  %s2 = inlined_call_operand.vmem [shape: f32[4,128], index: 2, kind: output, shape index: {}]
  %s3 = sld [smem:[#allocation0]]
  $region18: #{tsk_inference.1} parent=0
    _
  %s5 = ssub.s32 1, %s3
  %s6 = scalar_select 0, %s5, %s3
  // Predicated region
  $region2: #{tsk_inference.1} parent=0 // pred_check
    _
  $region3: #{tsk_inference.1} parent=0 // pred_check_branch
    %8 = sbr.rel (0) target = $region5
  $region4: #{tsk_inference.1} parent=0 // pred_region
    _
  $region5: #{tsk_inference.1} parent=0 // pred_fallthru
    _
  // Predicated region
  $region6: #{tsk_inference.1} parent=0 // pred_check
    _
  $region7: #{tsk_inference.1} parent=0 // pred_check_branch
    %10 = sbr.rel (0) target = $region9
  $region8: #{tsk_inference.1} parent=0 // pred_region
    _
  $region9: #{tsk_inference.1} parent=0 // pred_fallthru
    _
  %v11 = vld [vmem:[%s0] sm:$0xff]
  %v12 = vld [vmem:[%s1] sm:$0xf]
  %v13 = vld [vmem:[%s1 + $0x4] sm:$0xf]
  %v14 = vld [vmem:[%s1 + $0x8] sm:$0xf]
  %v15 = vld [vmem:[%s1 + $0xc] sm:$0xf]
  %v16 = vld [vmem:[%s1 + $0x10] sm:$0xf]
  %v17 = vld [vmem:[%s1 + $0x14] sm:$0xf]
  %v18 = vld [vmem:[%s1 + $0x18] sm:$0xf]
  %v19 = vld [vmem:[%s1 + $0x1c] sm:$0xf]
  %v20 = vlaneseq
  %v21 = vshrl.u32 %v20, 7
  %v22 = vsub.s32 0, %v21
  %v23 = vrot.slane %v11, %v22
  %v24 = vmul.f32 %v23, %v12
  %v25 = vlaneseq
  %v26 = vshrl.u32 %v25, 7
  %v27 = vsub.s32 1, %v26
  %v28 = vrot.slane %v11, %v27
  %v29 = vmul.f32 %v28, %v13
  %v30 = vadd.f32 %v24, %v29
  %v32 = vrot.slane %v11, 1
  %v34 = vadd.f32 %v11, %v32
  %v35 = vlaneseq
  %v36 = vshrl.u32 %v35, 7
  %v37 = vsub.s32 2, %v36
  %v38 = vrot.slane %v11, %v37
  %v39 = vmul.f32 %v38, %v14
  %v40 = vadd.f32 %v30, %v39
  %v41 = vrot.slane %v11, 2
  %v43 = vadd.f32 %v34, %v41
  %v44 = vlaneseq
  %v45 = vshrl.u32 %v44, 7
  %v46 = vsub.s32 3, %v45
  %v47 = vrot.slane %v11, %v46
  %v48 = vmul.f32 %v47, %v15
  %v49 = vadd.f32 %v40, %v48
  %v50 = vrot.slane %v11, 3
  %v52 = vadd.f32 %v43, %v50
  %v53 = vlaneseq
  %v54 = vshrl.u32 %v53, 7
  %v55 = vsub.s32 4, %v54
  %v56 = vrot.slane %v11, %v55
  %v57 = vmul.f32 %v56, %v16
  %v58 = vadd.f32 %v49, %v57
  %v59 = vrot.slane %v11, 4
  %v61 = vadd.f32 %v52, %v59
  %v62 = vlaneseq
  %v63 = vshrl.u32 %v62, 7
  %v64 = vsub.s32 5, %v63
  %v65 = vrot.slane %v11, %v64
  %v66 = vmul.f32 %v65, %v17
  %v67 = vadd.f32 %v58, %v66
  %v68 = vrot.slane %v11, 5
  %v70 = vadd.f32 %v61, %v68
  %v71 = vlaneseq
  %v72 = vshrl.u32 %v71, 7
  %v73 = vsub.s32 6, %v72
  %v74 = vrot.slane %v11, %v73
  %v75 = vmul.f32 %v74, %v18
  %v76 = vadd.f32 %v67, %v75
  %v77 = vrot.slane %v11, 6
  %v79 = vadd.f32 %v70, %v77
  %v80 = vlaneseq
  %v81 = vshrl.u32 %v80, 7
  %v82 = vsub.s32 7, %v81
  %v83 = vrot.slane %v11, %v82
  %v84 = vmul.f32 %v83, %v19
  %v85 = vadd.f32 %v76, %v84
  %v86 = vrot.slane %v11, 7
  %v88 = vadd.f32 %v79, %v86
  %v89 = vrcp.pop %v88
  %v90 = vmul.f32 %v88, %v89
  %v91 = vsub.f32 2.0, %v90
  %v92 = vmul.f32 %v89, %v91
  %v93 = vlaneseq
  %v94 = vshrl.u32 %v93, 7
  %v95 = vsub.s32 0, %v94
  %v96 = vrot.slane %v92, %v95
  %v97 = vmul.f32 %v85, %v96
  %98 = vst [vmem:[%s2] sm:$0xf] %v97
  // Predicated region
  $region10: #{tsk_inference.1} parent=0 // pred_check
    _
  $region11: #{tsk_inference.1} parent=0 // pred_check_branch
    %100 = sbr.rel (0) target = $region13
  $region12: #{tsk_inference.1} parent=0 // pred_region
    _
  $region13: #{tsk_inference.1} parent=0 // pred_fallthru
    _
  // Predicated region
  $region14: #{tsk_inference.1} parent=0 // pred_check
    _
  $region15: #{tsk_inference.1} parent=0 // pred_check_branch
    %102 = sbr.rel (0) target = $region17
  $region16: #{tsk_inference.1} parent=0 // pred_region
    _
  $region17: #{tsk_inference.1} parent=0 // pred_fallthru
    _

</llo_original>
